<compile_context>
chip_gen: v6e
topology: v6e:2x2x1
jax: 0.10.0
libtpu: 0.0.40
codegen_flags: <defaults>
</compile_context>

<pallas_src>
import functools

import jax
import jax.numpy as jnp
from jax import lax
from jax.experimental import pallas as pl
from jax.experimental.pallas import tpu as pltpu

EPS = 1e-6  # torch.nn.functional.pairwise_distance default eps

# VMEM budget for the double-buffered input tiles (3 inputs x 2 buffers).
# Kept <= ~24 MiB so the same tiling is safe on v7x (64 MiB physical VMEM)
# as well as v5e/v6e (128 MiB).
_INPUT_VMEM_BUDGET = 24 * 1024 * 1024
_VMEM_LIMIT_BYTES = 48 * 1024 * 1024
_MAX_BLOCK_BATCH = 2048


def _triplet_loss_kernel(a_ref, p_ref, n_ref, out_ref, *, block_batch, total_batch,
                         margin):
    i = pl.program_id(0)

    a = a_ref[...].astype(jnp.float32)
    p = p_ref[...].astype(jnp.float32)
    n = n_ref[...].astype(jnp.float32)

    dp = a - p + EPS
    dn = a - n + EPS

    # Fused: single cross-lane reduce of (dp^2 - dn^2). Zero-padded feature lanes
    # contribute eps^2 - eps^2 == 0 exactly, so D-padding is safe.
    e = dp * dp - dn * dn                                   # (tb, Dp)
    diff = jnp.sum(e, axis=-1, keepdims=True)               # (tb, 1)

    losses = 0.5 * jnp.maximum(margin + diff, 0.0)          # (tb, 1)

    # Mask out zero-padded tail rows (they would otherwise contribute 0.5*margin).
    row = i * block_batch + lax.broadcasted_iota(jnp.int32, losses.shape, 0)
    losses = jnp.where(row < total_batch, losses, 0.0)

    partial = jnp.sum(losses)                                # per-tile partial sum
    out_ref[...] = jnp.full(out_ref.shape, partial, dtype=jnp.float32)


def _round_up(x, m):
    return ((x + m - 1) // m) * m


def triplet_loss(anchor, positive, negative, *, margin=0.2):
    """anchor/positive/negative: (B, D) arrays. Returns scalar mean triplet loss."""
    B, D = anchor.shape
    assert positive.shape == (B, D) and negative.shape == (B, D)

    # Lane-dense feature dim.
    Dp = max(128, _round_up(D, 128))

    # Pick the largest batch tile that fits the double-buffered input budget.
    itemsize = jnp.dtype(anchor.dtype).itemsize
    per_row_bytes = 3 * 2 * Dp * itemsize           # 3 inputs x 2 pipeline buffers
    tb = min(_MAX_BLOCK_BATCH,
             _INPUT_VMEM_BUDGET // per_row_bytes,
             _round_up(B, 8))
    tb = max(8, (int(tb) // 8) * 8)

    B_pad = _round_up(B, tb)
    num_tiles = B_pad // tb

    def pad(x):
        return jnp.pad(x, ((0, B_pad - B), (0, Dp - D)))

    a, p, n = pad(anchor), pad(positive), pad(negative)

    in_spec = pl.BlockSpec((tb, Dp), lambda i: (i, 0))
    kernel = functools.partial(_triplet_loss_kernel, block_batch=tb,
                               total_batch=B, margin=float(margin))

    partials = pl.pallas_call(
        kernel,
        out_shape=jax.ShapeDtypeStruct((num_tiles, 1, 128), jnp.float32),
        grid_spec=pltpu.PrefetchScalarGridSpec(
            num_scalar_prefetch=0,
            grid=(num_tiles,),
            in_specs=[in_spec, in_spec, in_spec],
            out_specs=pl.BlockSpec((1, 1, 128), lambda i: (i, 0, 0)),
        ),
        compiler_params=pltpu.CompilerParams(
            dimension_semantics=("parallel",),      # independent tiles -> megacore OK
            vmem_limit_bytes=_VMEM_LIMIT_BYTES,
        ),
    )(a, p, n)

    # Final mean reduction over per-tile partial sums (tiny, done in the wrapper).
    return jnp.sum(partials[:, 0, 0]) / B


def _reference(anchor, positive, negative, margin=0.2):
    a = anchor.astype(jnp.float32)
    p = positive.astype(jnp.float32)
    n = negative.astype(jnp.float32)
    dp = jnp.sqrt(jnp.sum((a - p + EPS) ** 2, axis=-1))
    dn = jnp.sqrt(jnp.sum((a - n + EPS) ** 2, axis=-1))
    losses = 0.5 * jnp.maximum(margin + dp ** 2 - dn ** 2, 0.0)
    return jnp.mean(losses)


if __name__ == "__main__":
    key = jax.random.PRNGKey(0)

    # Case 1: small, "nice" shapes.
    ka, kp, kn = jax.random.split(key, 3)
    B, D = 8, 32
    anchor = jax.random.normal(ka, (B, D), dtype=jnp.float32)
    positive = anchor + 0.1 * jax.random.normal(kp, (B, D), dtype=jnp.float32)
    negative = jax.random.normal(kn, (B, D), dtype=jnp.float32)

    out = jax.block_until_ready(triplet_loss(anchor, positive, negative))
    ref = _reference(anchor, positive, negative)
    assert jnp.allclose(out, ref, atol=1e-5, rtol=1e-5), (out, ref)

    # Case 2: ragged batch / non-multiple-of-128 feature dim (exercises padding + masking).
    kb = jax.random.split(key, 4)
    B2, D2 = 10, 48
    a2 = jax.random.normal(kb[0], (B2, D2), dtype=jnp.float32)
    p2 = a2 + 0.1 * jax.random.normal(kb[1], (B2, D2), dtype=jnp.float32)
    n2 = jax.random.normal(kb[2], (B2, D2), dtype=jnp.float32)

    out2 = jax.block_until_ready(triplet_loss(a2, p2, n2))
    ref2 = _reference(a2, p2, n2)
    assert jnp.allclose(out2, ref2, atol=1e-5, rtol=1e-5), (out2, ref2)

    print("KERNEL_OK")
</pallas_src>

<mosaic_0001>
module attributes {stable_mosaic.version = 11 : i64} {
  func.func @_triplet_loss_kernel(%arg0: i32, %arg1: memref<8x128xf32, #tpu.memory_space<vmem>>, %arg2: memref<8x128xf32, #tpu.memory_space<vmem>>, %arg3: memref<8x128xf32, #tpu.memory_space<vmem>>, %arg4: memref<1x1x128xf32, #tpu.memory_space<vmem>>) attributes {dimension_semantics = [#tpu.dimension_semantics<parallel>], iteration_bounds = array<i64: 1>, scalar_prefetch = 0 : i64, scratch_operands = 0 : i64, tpu.core_type = #tpu.core_type<tc>, window_params = [{transform_indices = @transform_0, window_bounds = array<i64: 8, 128>}, {transform_indices = @transform_1, window_bounds = array<i64: 8, 128>}, {transform_indices = @transform_2, window_bounds = array<i64: 8, 128>}, {transform_indices = @transform_3, window_bounds = array<i64: 1, 1, 128>}]} {
    %c0 = arith.constant 0 : index
    %c0_0 = arith.constant 0 : index
    %0 = vector.load %arg1[%c0, %c0_0] : memref<8x128xf32, #tpu.memory_space<vmem>>, vector<8x128xf32>
    %c0_1 = arith.constant 0 : index
    %c0_2 = arith.constant 0 : index
    %1 = vector.load %arg2[%c0_1, %c0_2] : memref<8x128xf32, #tpu.memory_space<vmem>>, vector<8x128xf32>
    %c0_3 = arith.constant 0 : index
    %c0_4 = arith.constant 0 : index
    %2 = vector.load %arg3[%c0_3, %c0_4] : memref<8x128xf32, #tpu.memory_space<vmem>>, vector<8x128xf32>
    %3 = arith.subf %0, %1 : vector<8x128xf32>
    %cst = arith.constant 9.99999997E-7 : f32
    %4 = vector.broadcast %cst : f32 to vector<8x128xf32>
    %5 = arith.addf %3, %4 : vector<8x128xf32>
    %6 = arith.subf %0, %2 : vector<8x128xf32>
    %cst_5 = arith.constant 9.99999997E-7 : f32
    %7 = vector.broadcast %cst_5 : f32 to vector<8x128xf32>
    %8 = arith.addf %6, %7 : vector<8x128xf32>
    %9 = arith.mulf %5, %5 : vector<8x128xf32>
    %10 = arith.mulf %8, %8 : vector<8x128xf32>
    %11 = arith.subf %9, %10 : vector<8x128xf32>
    %cst_6 = arith.constant dense<0.000000e+00> : vector<8xf32>
    %12 = vector.multi_reduction <add>, %11, %cst_6 [1] : vector<8x128xf32> to vector<8xf32>
    %13 = vector.shape_cast %12 : vector<8xf32> to vector<8x1xf32>
    %cst_7 = arith.constant 2.000000e-01 : f32
    %14 = vector.broadcast %cst_7 : f32 to vector<8x1xf32>
    %15 = arith.addf %14, %13 : vector<8x1xf32>
    %cst_8 = arith.constant 0.000000e+00 : f32
    %16 = vector.broadcast %cst_8 : f32 to vector<8x1xf32>
    %17 = arith.maximumf %15, %16 : vector<8x1xf32>
    %cst_9 = arith.constant 5.000000e-01 : f32
    %18 = vector.broadcast %cst_9 : f32 to vector<8x1xf32>
    %19 = arith.mulf %18, %17 : vector<8x1xf32>
    %c8_i32 = arith.constant 8 : i32
    %20 = arith.muli %arg0, %c8_i32 : i32
    %21 = tpu.iota {dimensions = array<i32: 0>} : vector<8x1xi32>
    %22 = vector.broadcast %20 : i32 to vector<8x1xi32>
    %23 = arith.addi %22, %21 : vector<8x1xi32>
    %c8_i32_10 = arith.constant 8 : i32
    %24 = vector.broadcast %c8_i32_10 : i32 to vector<8x1xi32>
    %25 = arith.cmpi slt, %23, %24 : vector<8x1xi32>
    %cst_11 = arith.constant 0.000000e+00 : f32
    %26 = vector.broadcast %cst_11 : f32 to vector<8x1xf32>
    %27 = arith.select %25, %19, %26 : vector<8x1xi1>, vector<8x1xf32>
    %28 = vector.shape_cast %27 : vector<8x1xf32> to vector<1x8x1xf32>
    %cst_12 = arith.constant dense<0.000000e+00> : vector<1xf32>
    %29 = vector.multi_reduction <add>, %28, %cst_12 [1, 2] : vector<1x8x1xf32> to vector<1xf32>
    %30 = vector.shape_cast %29 : vector<1xf32> to vector<1x1x1xf32>
    %31 = vector.extract %30[0, 0, 0] : f32 from vector<1x1x1xf32>
    %32 = vector.broadcast %31 : f32 to vector<1x1x128xf32>
    %c0_13 = arith.constant 0 : index
    %c0_14 = arith.constant 0 : index
    %c0_15 = arith.constant 0 : index
    %33 = vector.load %arg4[%c0_13, %c0_14, %c0_15] : memref<1x1x128xf32, #tpu.memory_space<vmem>>, vector<1x1x128xf32>
    tpu.vector_store %arg4[%c0_13, %c0_14, %c0_15], %32 {strides = array<i32>} : memref<1x1x128xf32, #tpu.memory_space<vmem>>, vector<1x1x128xf32>,
    return
  }
  func.func @transform_0(%arg0: i32) -> (i32, i32) {
    %c0_i32 = arith.constant 0 : i32
    %c0_i32_0 = arith.constant 0 : i32
    return %arg0, %c0_i32 : i32, i32
  }
  func.func @transform_1(%arg0: i32) -> (i32, i32) {
    %c0_i32 = arith.constant 0 : i32
    %c0_i32_0 = arith.constant 0 : i32
    return %arg0, %c0_i32 : i32, i32
  }
  func.func @transform_2(%arg0: i32) -> (i32, i32) {
    %c0_i32 = arith.constant 0 : i32
    %c0_i32_0 = arith.constant 0 : i32
    return %arg0, %c0_i32 : i32, i32
  }
  func.func @transform_3(%arg0: i32) -> (i32, i32, i32) {
    %c0_i32 = arith.constant 0 : i32
    %c0_i32_0 = arith.constant 0 : i32
    %c0_i32_1 = arith.constant 0 : i32
    return %arg0, %c0_i32, %c0_i32_0 : i32, i32, i32
  }
}

</mosaic_0001>

<llo_original>
// kernel: tpu_custom_call.1
$region0: #{tpu_custom_call.1}
  #allocation0 [shape = 'u32[]', space=smem, size = 0x4, offset = 0x4, fixed_abs, tag = 'smem constant byte address 0x4 - core index']
  #allocation1 [shape = 'u32[144,128]{1,0:T(1,128)}', space=vmem, size = 0x12000, scoped, tag = 'internal scratch']
  %s0 = inlined_call_operand.hbm [shape: f32[8,128], index: 0, kind: input, shape index: {}]
  %s1 = inlined_call_operand.hbm [shape: f32[8,128], index: 1, kind: input, shape index: {}]
  %s2 = inlined_call_operand.hbm [shape: f32[8,128], index: 2, kind: input, shape index: {}]
  %s3 = inlined_call_operand.hbm [shape: f32[1,1,128], index: 3, kind: output, shape index: {}]
  %s4 = sld [smem:[#allocation0]]
  $region34: #{tpu_custom_call.1} parent=0
    _
  %s6 = ssub.s32 1, %s4
  %s7 = scalar_select 0, %s6, %s4
  $region1: #{tpu_custom_call.1} parent=0
    #allocation2 [shape = 'u8[4096]{0}', space=vmem, size = 0x1000, scoped, tag = 'input window, operand 0, single buffered']
    #allocation3 [shape = 's32[1]{0}', space=sflag, size = 0x4, scoped, tag = 'scoped memory for tpu_custom_call.1']
    #allocation4 [shape = 's32[1]{0}', space=sflag, size = 0x4, scoped, tag = 'scoped memory for tpu_custom_call.1']
    #allocation5 [shape = 'u8[4096]{0}', space=vmem, size = 0x1000, scoped, tag = 'input window, operand 1, single buffered']
    #allocation6 [shape = 's32[1]{0}', space=sflag, size = 0x4, scoped, tag = 'scoped memory for tpu_custom_call.1']
    #allocation7 [shape = 'u8[4096]{0}', space=vmem, size = 0x1000, scoped, tag = 'input window, operand 2, single buffered']
    #allocation8 [shape = 'u8[512]{0}', space=vmem, size = 0x400, scoped, tag = 'output window, operand 0, single buffered']
    %8 = vsyncpa [#allocation3], 0
    %9 = vsyncpa [#allocation6], 0
    %10 = vsyncpa [#allocation4], 0
    // Predicated region
    $region2: #{tpu_custom_call.1} parent=1 // pred_check
      _
    $region3: #{tpu_custom_call.1} parent=1 // pred_check_branch
      %12 = sbr.rel (0) target = $region5
    $region4: #{tpu_custom_call.1} parent=1 // pred_region
      %s14 = ssub.s32 128, 128
      %15 = vsyncadd [#allocation3], %s14
      %s17 = sshll.u32 [#allocation2], 4
      %s18 = int_to_ptr.vmem [resolvable:$true] %s17
      %20 = dma.hbm_to_vmem [thread:$0]  %s0, 128, %s18, [#allocation3]
    $region5: #{tpu_custom_call.1} parent=1 // pred_fallthru
      _
    // Predicated region
    $region6: #{tpu_custom_call.1} parent=1 // pred_check
      _
    $region7: #{tpu_custom_call.1} parent=1 // pred_check_branch
      %22 = sbr.rel (0) target = $region9
    $region8: #{tpu_custom_call.1} parent=1 // pred_region
      %s24 = ssub.s32 128, 128
      %25 = vsyncadd [#allocation6], %s24
      %s27 = sshll.u32 [#allocation5], 4
      %s28 = int_to_ptr.vmem [resolvable:$true] %s27
      %30 = dma.hbm_to_vmem [thread:$0]  %s1, 128, %s28, [#allocation6]
    $region9: #{tpu_custom_call.1} parent=1 // pred_fallthru
      _
    // Predicated region
    $region10: #{tpu_custom_call.1} parent=1 // pred_check
      _
    $region11: #{tpu_custom_call.1} parent=1 // pred_check_branch
      %32 = sbr.rel (0) target = $region13
    $region12: #{tpu_custom_call.1} parent=1 // pred_region
      %s34 = ssub.s32 128, 128
      %35 = vsyncadd [#allocation6], %s34
      %s37 = sshll.u32 [#allocation7], 4
      %s38 = int_to_ptr.vmem [resolvable:$true] %s37
      %40 = dma.hbm_to_vmem [thread:$0]  %s2, 128, %s38, [#allocation6]
    $region13: #{tpu_custom_call.1} parent=1 // pred_fallthru
      _
    // Predicated region
    $region14: #{tpu_custom_call.1} parent=1 // pred_check
      _
    $region15: #{tpu_custom_call.1} parent=1 // pred_check_branch
      %42 = sbr.rel (0) target = $region17
    $region16: #{tpu_custom_call.1} parent=1 // pred_region
      %43 = dma.done [#allocation3], 128
    $region17: #{tpu_custom_call.1} parent=1 // pred_fallthru
      _
    // Predicated region
    $region18: #{tpu_custom_call.1} parent=1 // pred_check
      _
    $region19: #{tpu_custom_call.1} parent=1 // pred_check_branch
      %45 = sbr.rel (0) target = $region21
    $region20: #{tpu_custom_call.1} parent=1 // pred_region
      %46 = dma.done [#allocation6], 128
    $region21: #{tpu_custom_call.1} parent=1 // pred_fallthru
      _
    // Predicated region
    $region22: #{tpu_custom_call.1} parent=1 // pred_check
      _
    $region23: #{tpu_custom_call.1} parent=1 // pred_check_branch
      %48 = sbr.rel (0) target = $region25
    $region24: #{tpu_custom_call.1} parent=1 // pred_region
      %49 = dma.done [#allocation6], 128
    $region25: #{tpu_custom_call.1} parent=1 // pred_fallthru
      _
    %v50 = vld [vmem:[#allocation2] sm:$0xff]
    %v51 = vld [vmem:[#allocation5] sm:$0xff]
    %v52 = vld [vmem:[#allocation7] sm:$0xff]
    %v53 = vsub.f32 %v50, %v51
    %v54 = vadd.f32 %v53, 1e-06
    %v55 = vsub.f32 %v50, %v52
    %v56 = vadd.f32 %v55, 1e-06
    %v57 = vmul.f32 %v54, %v54
    %v58 = vmul.f32 %v56, %v56
    %v59 = vsub.f32 %v57, %v58
    %60 = vadd.xlane.f32.xlu0 %v59
    %v61 = vpop.xlane.xlu0 %60
    %v62 = vadd.f32 %v61, 0.2
    %v63 = vmax.f32 %v62, 0.0
    %v64 = vmul.f32 %v63, 0.5
    %s65 = smul.u32 0, 8
    %v66 = vlaneseq
    %v67 = vshrl.u32 %v66, 7
    %v68 = vstv %s65
    %v69 = vadd.s32 %v68, %v67
    %vm70 = vcmp.lt.s32.totalorder %v69, 8
    %v71 = vsel %vm70, %v64, 0.0
    %vm72 = vcmask 7168
    %v73 = vsel %vm72, %v71, 0.0
    %74 = vadd.xlane.f32.xlu0 %v73
    %v75 = vpop.xlane.xlu0 %74
    %v76 = vrot.slane %v75, 4
    %v77 = vadd.f32 %v75, %v76
    %v78 = vrot.slane %v77, 2
    %v79 = vadd.f32 %v77, %v78
    %v80 = vrot.slane %v79, 1
    %v81 = vadd.f32 %v79, %v80
    %s82 = vtos %v81
    %v83 = vstv %s82
    %84 = vst [vmem:[#allocation8] sm:$0x1] %v83
    // Predicated region
    $region26: #{tpu_custom_call.1} parent=1 // pred_check
      _
    $region27: #{tpu_custom_call.1} parent=1 // pred_check_branch
      %86 = sbr.rel (0) target = $region29
    $region28: #{tpu_custom_call.1} parent=1 // pred_region
      %s88 = ssub.s32 16, 16
      %89 = vsyncadd [#allocation4], %s88
      %s91 = sshll.u32 [#allocation8], 4
      %s92 = int_to_ptr.vmem [resolvable:$true] %s91
      %94 = dma.vmem_to_hbm [thread:$0]  %s92, 16, %s3, [#allocation4]
    $region29: #{tpu_custom_call.1} parent=1 // pred_fallthru
      _
    // Predicated region
    $region30: #{tpu_custom_call.1} parent=1 // pred_check
      _
    $region31: #{tpu_custom_call.1} parent=1 // pred_check_branch
      %96 = sbr.rel (0) target = $region33
    $region32: #{tpu_custom_call.1} parent=1 // pred_region
      %97 = dma.done [#allocation4], 16
    $region33: #{tpu_custom_call.1} parent=1 // pred_fallthru
      _
    %98 = vsyncpa [#allocation3], 1
    %99 = vsyncpa [#allocation6], 1
    %100 = vsyncpa [#allocation4], 1

</llo_original>
